<compile_context>
chip_gen: v7x
topology: tpu7x:2x2x1
jax: 0.10.0
libtpu: 0.0.40
codegen_flags: <defaults>
</compile_context>

<pallas_src>
import functools

import jax
import jax.numpy as jnp
from jax.experimental import pallas as pl
from jax.experimental.pallas import tpu as pltpu


def _conv_gru_kernel(x_ref, h_ref, w_ih_ref, w_hh_ref, b_ref, o_ref, *,
                     matmul_dtype):
    """One (pixel-tile, batch) grid step.

    x_ref:    (1, C_in, tm)      input channels for this tile of pixels
    h_ref:    (1, Hd,   tm)      hidden state for this tile of pixels
    w_ih_ref: (4*Hd, C_in)       packed input->gate weights [r | z | n_ih | 0]
    w_hh_ref: (4*Hd, Hd)         packed hidden->gate weights [r | z | 0 | n_hh]
    b_ref:    (4*Hd, 1)          packed bias [b_r_ih+b_r_hh | b_z_ih+b_z_hh | b_n_ih | b_n_hh]
    o_ref:    (1, Hd, tm)        new hidden state
    """
    hd = o_ref.shape[1]

    # Cast to the matmul dtype *inside* the kernel (VMEM-local) so the wrapper
    # never materializes a bf16 copy of x / h in HBM.
    x = x_ref[0].astype(matmul_dtype)          # (C_in, tm)
    h = h_ref[0].astype(matmul_dtype)          # (Hd,   tm)

    # 1x1 convolutions == channel matmuls on the MXU, f32 accumulation.
    g = (jnp.dot(w_ih_ref[...], x, preferred_element_type=jnp.float32)
         + jnp.dot(w_hh_ref[...], h, preferred_element_type=jnp.float32)
         + b_ref[...])                          # (4*Hd, tm), f32

    if jnp.dtype(matmul_dtype) != jnp.dtype(jnp.float32):
        # bf16 transcendentals (2x EUP throughput on v6e/v7x); blend stays f32.
        r = jax.nn.sigmoid(g[0 * hd:1 * hd, :].astype(matmul_dtype)).astype(jnp.float32)
        z = jax.nn.sigmoid(g[1 * hd:2 * hd, :].astype(matmul_dtype)).astype(jnp.float32)
        n_pre = g[2 * hd:3 * hd, :] + g[3 * hd:4 * hd, :] * r
        n = jnp.tanh(n_pre.astype(matmul_dtype)).astype(jnp.float32)
    else:
        r = jax.nn.sigmoid(g[0 * hd:1 * hd, :])
        z = jax.nn.sigmoid(g[1 * hd:2 * hd, :])
        n = jnp.tanh(g[2 * hd:3 * hd, :] + g[3 * hd:4 * hd, :] * r)

    # Blend uses the unrounded (input-precision) hidden state.
    h_in = h_ref[0].astype(jnp.float32)
    o_ref[0] = ((1.0 - z) * n + z * h_in).astype(o_ref.dtype)


def pack_conv_gru_params(w_ih, b_ih, w_hh, b_hh, *, matmul_dtype=jnp.bfloat16):
    """Pack PyTorch Conv2d(1x1) GRU weights once (hoist out of the per-step call).

    Row layout of the packed 4*Hd gate block: [r | z | n_ih | n_hh], with the
    r/z biases of the two paths pre-summed.
      w_ih4: (4*Hd, C_in)   rows [3Hd:4Hd) are zero
      w_hh4: (4*Hd, Hd)     rows [2Hd:3Hd) are zero
      b4:    (4*Hd, 1) f32
    """
    three_hd, c_in = int(w_ih.shape[0]), int(w_ih.shape[1])
    hidden = three_hd // 3
    w_ih2 = w_ih.reshape(3 * hidden, c_in)
    w_hh2 = w_hh.reshape(3 * hidden, hidden)
    wih_r, wih_z, wih_n = jnp.split(w_ih2, 3, axis=0)
    whh_r, whh_z, whh_n = jnp.split(w_hh2, 3, axis=0)
    # TODO(synk): for hidden >= 128 the zero quarter stops being MXU-free
    # (ceil(4*Hd/tile) > ceil(3*Hd/tile)); switch to two unpadded 3*Hd matmuls.
    w_ih4 = jnp.concatenate(
        [wih_r, wih_z, wih_n, jnp.zeros((hidden, c_in), w_ih2.dtype)], axis=0
    ).astype(matmul_dtype)                                    # (4*Hd, C_in)
    w_hh4 = jnp.concatenate(
        [whh_r, whh_z, jnp.zeros((hidden, hidden), w_hh2.dtype), whh_n], axis=0
    ).astype(matmul_dtype)                                    # (4*Hd, Hd)
    b4 = jnp.concatenate(
        [b_ih[:hidden] + b_hh[:hidden],
         b_ih[hidden:2 * hidden] + b_hh[hidden:2 * hidden],
         b_ih[2 * hidden:],
         b_hh[2 * hidden:]]
    ).reshape(4 * hidden, 1).astype(jnp.float32)              # (4*Hd, 1)
    return w_ih4, w_hh4, b4


def conv_gru_cell_packed(x_nchw, h_nchw, w_ih4, w_hh4, b4, *,
                         tm=8192, matmul_dtype=jnp.bfloat16, out_dtype=None):
    """ConvGRUCell forward (kernel_size=(1,1)) with pre-packed weights.

    x_nchw: (N, C_in, H, W);  h_nchw: (N, Hd, H, W)
    Returns h' with shape (N, Hd, H, W) and dtype `out_dtype` (default: x dtype).
    """
    N, C_in, H, W = x_nchw.shape
    hidden = h_nchw.shape[1]
    HW = H * W
    if out_dtype is None:
        out_dtype = x_nchw.dtype

    # NCHW -> (N, C, H*W): metadata reshape only; channels on sublanes, the
    # large pixel axis on lanes (lane-dense loads/stores, no transpose passes).
    x3 = x_nchw.reshape(N, C_in, HW)
    h3 = h_nchw.reshape(N, hidden, HW)

    # Pixel tile: big (amortize ~0.35 us/step pipeline overhead), lane-dense
    # (multiple of 128) when it tiles the pixel axis, full extent otherwise.
    tm = int(tm)
    if tm >= HW:
        tm = HW
    else:
        tm = max(128, (tm // 128) * 128)
    # Pixel axis leads the grid -> even sharding across v7x's two cores.
    grid = (pl.cdiv(HW, tm), N)

    # VMEM budget: double-buffered streaming tiles + (double-buffered) weights
    # + f32 gate temporaries + in-kernel bf16 casts.  Never clamp below the
    # working set; cap at ~3/4 of physical per-core VMEM.
    x_b = x3.dtype.itemsize
    h_b = h3.dtype.itemsize
    o_b = jnp.dtype(out_dtype).itemsize
    mm_b = jnp.dtype(matmul_dtype).itemsize
    w_b = jnp.dtype(w_ih4.dtype).itemsize
    io_per_step = tm * (C_in * x_b + hidden * h_b + hidden * o_b)
    w_bytes = 4 * hidden * (C_in + hidden) * w_b + 4 * hidden * 4
    interm = 8 * hidden * tm * 4 + (C_in + hidden) * tm * mm_b
    need = 2 * io_per_step + 2 * w_bytes + interm
    try:
        phys = int(getattr(pltpu.get_tpu_info(), "vmem_capacity_bytes", 64 << 20))
    except Exception:  # conservative fallback if the query is unavailable
        phys = 64 << 20
    cap = (phys * 3) // 4                       # 48 MiB on v7x, 96 MiB on v5e/v6e
    vmem_limit = int(min(max(need + (8 << 20), 16 << 20), cap))
    vmem_limit = int(max(vmem_limit, min(need + (2 << 20), phys)))

    kernel = functools.partial(_conv_gru_kernel, matmul_dtype=matmul_dtype)

    out3 = pl.pallas_call(
        kernel,
        out_shape=jax.ShapeDtypeStruct((N, hidden, HW), out_dtype),
        grid_spec=pltpu.PrefetchScalarGridSpec(
            num_scalar_prefetch=0,
            grid=grid,
            in_specs=[
                pl.BlockSpec((1, C_in, tm), lambda j, b: (b, 0, j)),      # x tile
                pl.BlockSpec((1, hidden, tm), lambda j, b: (b, 0, j)),    # h tile
                # Constant index_map -> fetched once, stays resident in VMEM.
                pl.BlockSpec((4 * hidden, C_in), lambda j, b: (0, 0)),    # w_ih packed
                pl.BlockSpec((4 * hidden, hidden), lambda j, b: (0, 0)),  # w_hh packed
                pl.BlockSpec((4 * hidden, 1), lambda j, b: (0, 0)),       # bias packed
            ],
            out_specs=pl.BlockSpec((1, hidden, tm), lambda j, b: (b, 0, j)),
        ),
        compiler_params=pltpu.CompilerParams(
            dimension_semantics=("parallel", "parallel"),
            vmem_limit_bytes=vmem_limit),
    )(x3, h3, w_ih4, w_hh4, b4)

    # (N, Hd, H*W) -> (N, Hd, H, W): pure reshape.
    return out3.reshape(N, hidden, H, W)


def conv_gru_cell(x_nchw, h_nchw, w_ih, b_ih, w_hh, b_hh, *,
                  tm=8192, matmul_dtype=jnp.bfloat16, out_dtype=None):
    """Convenience wrapper: packs weights then calls the kernel.  For a
    recurrent loop, call pack_conv_gru_params() once and use
    conv_gru_cell_packed() per timestep (weight packing hoisted)."""
    packed = pack_conv_gru_params(w_ih, b_ih, w_hh, b_hh, matmul_dtype=matmul_dtype)
    return conv_gru_cell_packed(x_nchw, h_nchw, *packed,
                                tm=tm, matmul_dtype=matmul_dtype,
                                out_dtype=out_dtype)


def _reference(x_nchw, h_nchw, w_ih, b_ih, w_hh, b_hh):
    """Pure-JAX f32 reference matching the PyTorch semantics (1x1 convs)."""
    N, C_in, H, W = x_nchw.shape
    hidden = h_nchw.shape[1]
    x2d = jnp.transpose(x_nchw, (0, 2, 3, 1)).reshape(-1, C_in)
    h2d = jnp.transpose(h_nchw, (0, 2, 3, 1)).reshape(-1, hidden)
    gi = x2d @ w_ih.reshape(3 * hidden, C_in).T + b_ih
    gh = h2d @ w_hh.reshape(3 * hidden, hidden).T + b_hh
    r1, z1, n1 = jnp.split(gi, 3, axis=1)
    r2, z2, n2 = jnp.split(gh, 3, axis=1)
    r = jax.nn.sigmoid(r1 + r2)
    z = jax.nn.sigmoid(z1 + z2)
    n = jnp.tanh(n1 + n2 * r)
    h_new = (1 - z) * n + z * h2d
    return jnp.transpose(h_new.reshape(N, H, W, hidden), (0, 3, 1, 2))


if __name__ == "__main__":
    # Small shapes consistent with the module's forward.
    batch, input_size, hidden_size, spatial = 2, 4, 32, 16

    key = jax.random.PRNGKey(0)
    k_x, k_h, k_wih, k_whh, k_bih, k_bhh = jax.random.split(key, 6)

    x = jax.random.normal(k_x, (batch, input_size, spatial, spatial), jnp.float32)
    hx = jax.random.normal(k_h, (batch, hidden_size, spatial, spatial), jnp.float32)

    # Deterministic param init: kaiming_normal_(mode='fan_out', 'relu'):
    #   std = sqrt(2 / fan_out), fan_out = out_channels * kH * kW = 3*hidden.
    std = (2.0 / (3 * hidden_size)) ** 0.5
    w_ih = std * jax.random.normal(k_wih, (3 * hidden_size, input_size, 1, 1), jnp.float32)
    w_hh = std * jax.random.normal(k_whh, (3 * hidden_size, hidden_size, 1, 1), jnp.float32)
    b_ih = 0.05 * jax.random.normal(k_bih, (3 * hidden_size,), jnp.float32)
    b_hh = 0.05 * jax.random.normal(k_bhh, (3 * hidden_size,), jnp.float32)

    h_ref = _reference(x, hx, w_ih, b_ih, w_hh, b_hh)

    # Exact path: f32 matmuls must match the f32 reference tightly.
    h_f32 = jax.block_until_ready(
        conv_gru_cell(x, hx, w_ih, b_ih, w_hh, b_hh, matmul_dtype=jnp.float32))
    assert h_f32.shape == (batch, hidden_size, spatial, spatial)
    assert jnp.allclose(h_f32, h_ref, atol=1e-5, rtol=1e-5), "f32 path mismatch vs reference"

    # Fast (default) path: bf16 matmuls + bf16 transcendentals, f32 blend,
    # f32 output.  Tolerance covers bf16 rounding only.
    h_bf16 = jax.block_until_ready(conv_gru_cell(x, hx, w_ih, b_ih, w_hh, b_hh))
    assert h_bf16.shape == (batch, hidden_size, spatial, spatial)
    assert h_bf16.dtype == jnp.float32
    assert jnp.allclose(h_bf16, h_ref, atol=5e-2, rtol=5e-2), "bf16 path mismatch vs reference"

    # Hoisted-packing + bf16-state path (as a recurrent loop would use it).
    packed = pack_conv_gru_params(w_ih, b_ih, w_hh, b_hh)
    h_bf16_state = jax.block_until_ready(
        conv_gru_cell_packed(x, hx, *packed, out_dtype=jnp.bfloat16))
    assert h_bf16_state.dtype == jnp.bfloat16
    assert jnp.allclose(h_bf16_state.astype(jnp.float32), h_ref, atol=8e-2, rtol=8e-2), \
        "bf16-state path mismatch vs reference"

    print("KERNEL_OK")
</pallas_src>

<mosaic_0001>
module attributes {stable_mosaic.version = 11 : i64} {
  func.func @_conv_gru_kernel(%arg0: i32, %arg1: i32, %arg2: memref<1x4x256xf32, #tpu.memory_space<vmem>>, %arg3: memref<1x32x256xf32, #tpu.memory_space<vmem>>, %arg4: memref<128x4xf32, #tpu.memory_space<vmem>>, %arg5: memref<128x32xf32, #tpu.memory_space<vmem>>, %arg6: memref<128x1xf32, #tpu.memory_space<vmem>>, %arg7: memref<1x32x256xf32, #tpu.memory_space<vmem>>) attributes {dimension_semantics = [#tpu.dimension_semantics<parallel>, #tpu.dimension_semantics<parallel>], iteration_bounds = array<i64: 1, 2>, scalar_prefetch = 0 : i64, scratch_operands = 0 : i64, tpu.core_type = #tpu.core_type<tc>, window_params = [{transform_indices = @transform_0, window_bounds = array<i64: 1, 4, 256>}, {transform_indices = @transform_1, window_bounds = array<i64: 1, 32, 256>}, {pipeline_mode = #tpu.pipeline_mode<synchronous>, transform_indices = @transform_2, window_bounds = array<i64: 128, 4>}, {pipeline_mode = #tpu.pipeline_mode<synchronous>, transform_indices = @transform_3, window_bounds = array<i64: 128, 32>}, {pipeline_mode = #tpu.pipeline_mode<synchronous>, transform_indices = @transform_4, window_bounds = array<i64: 128, 1>}, {transform_indices = @transform_5, window_bounds = array<i64: 1, 32, 256>}]} {
    %c0 = arith.constant 0 : index
    %c0_0 = arith.constant 0 : index
    %c0_1 = arith.constant 0 : index
    %0 = vector.load %arg2[%c0, %c0_0, %c0_1] : memref<1x4x256xf32, #tpu.memory_space<vmem>>, vector<1x4x256xf32>
    %1 = vector.shape_cast %0 : vector<1x4x256xf32> to vector<4x256xf32>
    %c0_2 = arith.constant 0 : index
    %c0_3 = arith.constant 0 : index
    %c0_4 = arith.constant 0 : index
    %2 = vector.load %arg3[%c0_2, %c0_3, %c0_4] : memref<1x32x256xf32, #tpu.memory_space<vmem>>, vector<1x32x256xf32>
    %3 = vector.shape_cast %2 : vector<1x32x256xf32> to vector<32x256xf32>
    %c0_5 = arith.constant 0 : index
    %c0_6 = arith.constant 0 : index
    %4 = vector.load %arg4[%c0_5, %c0_6] : memref<128x4xf32, #tpu.memory_space<vmem>>, vector<128x4xf32>
    %cst = arith.constant dense<0.000000e+00> : vector<128x256xf32>
    %5 = tpu.matmul %4, %1, %cst {dimension_numbers = #tpu.dot_dimension_numbers<[1], [0], [0], [1], [0, 0, 1, 1], [], []>} : vector<128x4xf32>, vector<4x256xf32>, vector<128x256xf32> -> vector<128x256xf32>
    %c0_7 = arith.constant 0 : index
    %c0_8 = arith.constant 0 : index
    %6 = vector.load %arg5[%c0_7, %c0_8] : memref<128x32xf32, #tpu.memory_space<vmem>>, vector<128x32xf32>
    %cst_9 = arith.constant dense<0.000000e+00> : vector<128x256xf32>
    %7 = tpu.matmul %6, %3, %cst_9 {dimension_numbers = #tpu.dot_dimension_numbers<[1], [0], [0], [1], [0, 0, 1, 1], [], []>} : vector<128x32xf32>, vector<32x256xf32>, vector<128x256xf32> -> vector<128x256xf32>
    %8 = arith.addf %5, %7 : vector<128x256xf32>
    %c0_10 = arith.constant 0 : index
    %c0_11 = arith.constant 0 : index
    %9 = vector.load %arg6[%c0_10, %c0_11] : memref<128x1xf32, #tpu.memory_space<vmem>>, vector<128x1xf32>
    %10 = vector.broadcast %9 : vector<128x1xf32> to vector<128x256xf32>
    %11 = arith.addf %8, %10 : vector<128x256xf32>
    %12 = vector.extract_strided_slice %11 {offsets = [0, 0], sizes = [32, 256], strides = [1, 1]} : vector<128x256xf32> to vector<32x256xf32>
    %13 = arith.negf %12 : vector<32x256xf32>
    %14 = math.exp %13 : vector<32x256xf32>
    %cst_12 = arith.constant 1.000000e+00 : f32
    %15 = vector.broadcast %cst_12 : f32 to vector<32x256xf32>
    %16 = arith.addf %15, %14 : vector<32x256xf32>
    %17 = arith.divf %15, %16 : vector<32x256xf32>
    %18 = vector.extract_strided_slice %11 {offsets = [32, 0], sizes = [32, 256], strides = [1, 1]} : vector<128x256xf32> to vector<32x256xf32>
    %19 = arith.negf %18 : vector<32x256xf32>
    %20 = math.exp %19 : vector<32x256xf32>
    %cst_13 = arith.constant 1.000000e+00 : f32
    %21 = vector.broadcast %cst_13 : f32 to vector<32x256xf32>
    %22 = arith.addf %21, %20 : vector<32x256xf32>
    %23 = arith.divf %21, %22 : vector<32x256xf32>
    %24 = vector.extract_strided_slice %11 {offsets = [64, 0], sizes = [32, 256], strides = [1, 1]} : vector<128x256xf32> to vector<32x256xf32>
    %25 = vector.extract_strided_slice %11 {offsets = [96, 0], sizes = [32, 256], strides = [1, 1]} : vector<128x256xf32> to vector<32x256xf32>
    %26 = arith.mulf %25, %17 : vector<32x256xf32>
    %27 = arith.addf %24, %26 : vector<32x256xf32>
    %28 = math.tanh %27 : vector<32x256xf32>
    %c0_14 = arith.constant 0 : index
    %c0_15 = arith.constant 0 : index
    %c0_16 = arith.constant 0 : index
    %29 = vector.load %arg3[%c0_14, %c0_15, %c0_16] : memref<1x32x256xf32, #tpu.memory_space<vmem>>, vector<1x32x256xf32>
    %30 = vector.shape_cast %29 : vector<1x32x256xf32> to vector<32x256xf32>
    %cst_17 = arith.constant 1.000000e+00 : f32
    %31 = vector.broadcast %cst_17 : f32 to vector<32x256xf32>
    %32 = arith.subf %31, %23 : vector<32x256xf32>
    %33 = arith.mulf %32, %28 : vector<32x256xf32>
    %34 = arith.mulf %23, %30 : vector<32x256xf32>
    %35 = arith.addf %33, %34 : vector<32x256xf32>
    %c0_18 = arith.constant 0 : index
    %c0_19 = arith.constant 0 : index
    %c0_20 = arith.constant 0 : index
    %36 = vector.load %arg7[%c0_18, %c0_19, %c0_20] : memref<1x32x256xf32, #tpu.memory_space<vmem>>, vector<1x32x256xf32>
    %37 = vector.shape_cast %36 : vector<1x32x256xf32> to vector<32x256xf32>
    %38 = vector.shape_cast %35 : vector<32x256xf32> to vector<1x32x256xf32>
    tpu.vector_store %arg7[%c0_18, %c0_19, %c0_20], %38 {strides = array<i32>} : memref<1x32x256xf32, #tpu.memory_space<vmem>>, vector<1x32x256xf32>,
    return
  }
  func.func @transform_0(%arg0: i32, %arg1: i32) -> (i32, i32, i32) {
    %c0_i32 = arith.constant 0 : i32
    %c0_i32_0 = arith.constant 0 : i32
    return %arg1, %c0_i32, %arg0 : i32, i32, i32
  }
  func.func @transform_1(%arg0: i32, %arg1: i32) -> (i32, i32, i32) {
    %c0_i32 = arith.constant 0 : i32
    %c0_i32_0 = arith.constant 0 : i32
    return %arg1, %c0_i32, %arg0 : i32, i32, i32
  }
  func.func @transform_2(%arg0: i32, %arg1: i32) -> (i32, i32) {
    %c0_i32 = arith.constant 0 : i32
    %c0_i32_0 = arith.constant 0 : i32
    %c0_i32_1 = arith.constant 0 : i32
    return %c0_i32, %c0_i32_0 : i32, i32
  }
  func.func @transform_3(%arg0: i32, %arg1: i32) -> (i32, i32) {
    %c0_i32 = arith.constant 0 : i32
    %c0_i32_0 = arith.constant 0 : i32
    %c0_i32_1 = arith.constant 0 : i32
    return %c0_i32, %c0_i32_0 : i32, i32
  }
  func.func @transform_4(%arg0: i32, %arg1: i32) -> (i32, i32) {
    %c0_i32 = arith.constant 0 : i32
    %c0_i32_0 = arith.constant 0 : i32
    %c0_i32_1 = arith.constant 0 : i32
    return %c0_i32, %c0_i32_0 : i32, i32
  }
  func.func @transform_5(%arg0: i32, %arg1: i32) -> (i32, i32, i32) {
    %c0_i32 = arith.constant 0 : i32
    %c0_i32_0 = arith.constant 0 : i32
    return %arg1, %c0_i32, %arg0 : i32, i32, i32
  }
}

</mosaic_0001>

<llo_original>
// kernel: tpu_custom_call.1
$region0: #{tpu_custom_call.1}
  #allocation0 [shape = 'u32[]', space=smem, size = 0x4, offset = 0x4, fixed_abs, tag = 'smem constant byte address 0x4 - core index']
  #allocation1 [shape = 'u32[144,128]{1,0:T(1,128)}', space=vmem, size = 0x12000, scoped, tag = 'internal scratch']
  %s0 = inlined_call_operand.vmem [shape: f32[2,4,256], index: 0, kind: input, shape index: {}]
  %s1 = inlined_call_operand.vmem [shape: f32[2,32,256], index: 1, kind: input, shape index: {}]
  %s2 = inlined_call_operand.vmem [shape: f32[128,4], index: 2, kind: input, shape index: {}]
  %s3 = inlined_call_operand.vmem [shape: f32[128,32], index: 3, kind: input, shape index: {}]
  %s4 = inlined_call_operand.vmem [shape: f32[128,1], index: 4, kind: input, shape index: {}]
  %s5 = inlined_call_operand.hbm [shape: f32[2,32,256], index: 5, kind: output, shape index: {}]
  %s6 = sld [smem:[#allocation0]]
  $region53: #{tpu_custom_call.1} parent=0
    _
  %s8 = ssub.s32 1, %s6
  %s9 = scalar_select 0, %s8, %s6
  $region1: #{tpu_custom_call.1} parent=0
    #allocation2 [shape = 'u8[65536]{0}', space=vmem, size = 0x10000, scoped, tag = 'output window, operand 0']
    #allocation3 [shape = 's32[2]{0}', space=sflag, size = 0x8, scoped, tag = 'scoped memory for tpu_custom_call.1']
    %10 = vsyncpa [#allocation3], 0
    %s11 = scalar_lea.sflag [#allocation3], 1
    %12 = vsyncpa %s11, 0
    loop: start=0, step=1, limit=4
    $region2: #{tpu_custom_call.1} parent=1 // loop_pre_header
      _
    $region3: #{tpu_custom_call.1} parent=1 // loop_header
      %s14 = sphi 0, %s18
      %p15 = scmp.ge.s32.totalorder %s14, 4
      %s21 = sphi 0, %s33
      %s22 = sphi 0, %s29
      %s23 = sphi 0, %s21
      %s24 = sphi 0, %s22
      %s25 = sphi 0, %s23
      %s26 = sphi 0, %s24
      %s38 = sphi 0, %s40
      %s41 = sphi 0, %s38
      %s42 = sphi 0, %s41
      %s58 = sphi 0, %s42
      %s66 = sphi 0, %s68
      %s69 = sphi 0, %s66
      %s70 = sphi 0, %s69
      %s86 = sphi 0, %s70
      %s90 = sphi 0, %s90
      %s92 = sphi 0, %s90
      %s93 = sphi 0, %s92
      %s107 = sphi 0, %s93
      %s111 = sphi 0, %s111
      %s113 = sphi 0, %s111
      %s114 = sphi 0, %s113
      %s128 = sphi 0, %s114
      %s132 = sphi 0, %s132
      %s134 = sphi 0, %s132
      %s135 = sphi 0, %s134
      %s149 = sphi 0, %s135
      %s157 = sphi 0, %s159
      %s160 = sphi 0, %s157
      %s161 = sphi 0, %s160
      %s177 = sphi 0, %s161
    $region4: #{tpu_custom_call.1} parent=1 // loop_header_branch
      %17 = sbr.rel (%p15) target = $region8
    $region5: #{tpu_custom_call.1} parent=1 // loop_body
      %s19 = ssub.s32 %s14, 1
      %s20 = ssub.s32 %s14, 2
      %s27 = sadd.s32 1, %s22
      %p28 = scmp.ge.s32.totalorder %s27, 2
      %s29 = scalar_select %p28, 0, %s27
      %s30 = sadd.s32 1, %s21
      %s31 = scalar_select %p28, %s30, %s21
      %p32 = scmp.ge.s32.totalorder %s31, 1
      %s33 = scalar_select %p32, 0, %s31
      %s34 = ssub.s32 %s22, %s29
      %s35 = ssub.s32 %s21, %s33
      %s36 = sor.u32 %s34, %s35
      %p37 = scmp.eq.s32.totalorder %s36, 0
      %s39 = sadd.s32 %s38, 1
      %s40 = scalar_select %p37, %s38, %s39
      %p43 = pneg %p37
      %p44 = scmp.eq.s32.totalorder %s14, 1
      %p45 = por %p43, %p44
      %p46 = scmp.ne.s32.totalorder %s38, %s41
      %p47 = scmp.eq.s32.totalorder %s14, 0
      %p48 = por %p46, %p47
      %p49 = scmp.ne.s32.totalorder %s38, %s41
      %p50 = scmp.eq.s32.totalorder %s19, 1
      %p51 = por %p49, %p50
      %p52 = scmp.ne.s32.totalorder %s41, %s42
      %p53 = scmp.eq.s32.totalorder %s19, 0
      %p54 = por %p52, %p53
      %p55 = scmp.ne.s32.totalorder %s41, %s42
      %p56 = scmp.eq.s32.totalorder %s20, 1
      %p57 = por %p55, %p56
      %p59 = scmp.ne.s32.totalorder %s42, %s58
      %p60 = scmp.eq.s32.totalorder %s20, 0
      %p61 = por %p59, %p60
      %s62 = ssub.s32 %s22, %s29
      %s63 = ssub.s32 %s21, %s33
      %s64 = sor.u32 %s62, %s63
      %p65 = scmp.eq.s32.totalorder %s64, 0
      %s67 = sadd.s32 %s66, 1
      %s68 = scalar_select %p65, %s66, %s67
      %p71 = pneg %p65
      %p72 = scmp.eq.s32.totalorder %s14, 1
      %p73 = por %p71, %p72
      %p74 = scmp.ne.s32.totalorder %s66, %s69
      %p75 = scmp.eq.s32.totalorder %s14, 0
      %p76 = por %p74, %p75
      %p77 = scmp.ne.s32.totalorder %s66, %s69
      %p78 = scmp.eq.s32.totalorder %s19, 1
      %p79 = por %p77, %p78
      %p80 = scmp.ne.s32.totalorder %s69, %s70
      %p81 = scmp.eq.s32.totalorder %s19, 0
      %p82 = por %p80, %p81
      %p83 = scmp.ne.s32.totalorder %s69, %s70
      %p84 = scmp.eq.s32.totalorder %s20, 1
      %p85 = por %p83, %p84
      %p87 = scmp.ne.s32.totalorder %s70, %s86
      %p88 = scmp.eq.s32.totalorder %s20, 0
      %p89 = por %p87, %p88
      %s91 = sadd.s32 %s90, 1
      %p94 = scmp.eq.s32.totalorder %s14, 1
      %p95 = scmp.ne.s32.totalorder %s90, %s92
      %p96 = scmp.eq.s32.totalorder %s14, 0
      %p97 = por %p95, %p96
      %p98 = scmp.ne.s32.totalorder %s90, %s92
      %p99 = scmp.eq.s32.totalorder %s19, 1
      %p100 = por %p98, %p99
      %p101 = scmp.ne.s32.totalorder %s92, %s93
      %p102 = scmp.eq.s32.totalorder %s19, 0
      %p103 = por %p101, %p102
      %p104 = scmp.ne.s32.totalorder %s92, %s93
      %p105 = scmp.eq.s32.totalorder %s20, 1
      %p106 = por %p104, %p105
      %p108 = scmp.ne.s32.totalorder %s93, %s107
      %p109 = scmp.eq.s32.totalorder %s20, 0
      %p110 = por %p108, %p109
      %s112 = sadd.s32 %s111, 1
      %p115 = scmp.eq.s32.totalorder %s14, 1
      %p116 = scmp.ne.s32.totalorder %s111, %s113
      %p117 = scmp.eq.s32.totalorder %s14, 0
      %p118 = por %p116, %p117
      %p119 = scmp.ne.s32.totalorder %s111, %s113
      %p120 = scmp.eq.s32.totalorder %s19, 1
      %p121 = por %p119, %p120
      %p122 = scmp.ne.s32.totalorder %s113, %s114
      %p123 = scmp.eq.s32.totalorder %s19, 0
      %p124 = por %p122, %p123
      %p125 = scmp.ne.s32.totalorder %s113, %s114
      %p126 = scmp.eq.s32.totalorder %s20, 1
      %p127 = por %p125, %p126
      %p129 = scmp.ne.s32.totalorder %s114, %s128
      %p130 = scmp.eq.s32.totalorder %s20, 0
      %p131 = por %p129, %p130
      %s133 = sadd.s32 %s132, 1
      %p136 = scmp.eq.s32.totalorder %s14, 1
      %p137 = scmp.ne.s32.totalorder %s132, %s134
      %p138 = scmp.eq.s32.totalorder %s14, 0
      %p139 = por %p137, %p138
      %p140 = scmp.ne.s32.totalorder %s132, %s134
      %p141 = scmp.eq.s32.totalorder %s19, 1
      %p142 = por %p140, %p141
      %p143 = scmp.ne.s32.totalorder %s134, %s135
      %p144 = scmp.eq.s32.totalorder %s19, 0
      %p145 = por %p143, %p144
      %p146 = scmp.ne.s32.totalorder %s134, %s135
      %p147 = scmp.eq.s32.totalorder %s20, 1
      %p148 = por %p146, %p147
      %p150 = scmp.ne.s32.totalorder %s135, %s149
      %p151 = scmp.eq.s32.totalorder %s20, 0
      %p152 = por %p150, %p151
      %s153 = ssub.s32 %s22, %s29
      %s154 = ssub.s32 %s21, %s33
      %s155 = sor.u32 %s153, %s154
      %p156 = scmp.eq.s32.totalorder %s155, 0
      %s158 = sadd.s32 %s157, 1
      %s159 = scalar_select %p156, %s157, %s158
      %p162 = pneg %p156
      %p163 = scmp.eq.s32.totalorder %s14, 1
      %p164 = por %p162, %p163
      %p165 = scmp.ne.s32.totalorder %s157, %s160
      %p166 = scmp.eq.s32.totalorder %s14, 0
      %p167 = por %p165, %p166
      %p168 = scmp.ne.s32.totalorder %s157, %s160
      %p169 = scmp.eq.s32.totalorder %s19, 1
      %p170 = por %p168, %p169
      %p171 = scmp.ne.s32.totalorder %s160, %s161
      %p172 = scmp.eq.s32.totalorder %s19, 0
      %p173 = por %p171, %p172
      %p174 = scmp.ne.s32.totalorder %s160, %s161
      %p175 = scmp.eq.s32.totalorder %s20, 1
      %p176 = por %p174, %p175
      %p178 = scmp.ne.s32.totalorder %s161, %s177
      %p179 = scmp.eq.s32.totalorder %s20, 0
      %p180 = por %p178, %p179
      %p181 = scmp.le.s32.totalorder 1, %s14
      %p182 = scmp.lt.s32.totalorder %s14, 3
      %p183 = pnand %p181, %p182
      %p184 = pneg %p183
      // Predicated region
      $region9: #{tpu_custom_call.1} parent=5 // pred_check
        _
      $region10: #{tpu_custom_call.1} parent=5 // pred_check_branch
        %186 = sbr.rel (%p183) target = $region12
      $region11: #{tpu_custom_call.1} parent=5 // pred_region
        %s187 = ssub.s32 %s14, 1
        // Predicated region
        $region13: #{tpu_custom_call.1} parent=11 // pred_check
          %p188 = pneg %p103
        $region14: #{tpu_custom_call.1} parent=11 // pred_check_branch
          %190 = sbr.rel (%p188) target = $region16
        $region15: #{tpu_custom_call.1} parent=11 // pred_region
          _
        $region16: #{tpu_custom_call.1} parent=11 // pred_fallthru
          _
        // Predicated region
        $region17: #{tpu_custom_call.1} parent=11 // pred_check
          %p191 = pneg %p124
        $region18: #{tpu_custom_call.1} parent=11 // pred_check_branch
          %193 = sbr.rel (%p191) target = $region20
        $region19: #{tpu_custom_call.1} parent=11 // pred_region
          _
        $region20: #{tpu_custom_call.1} parent=11 // pred_fallthru
          _
        // Predicated region
        $region21: #{tpu_custom_call.1} parent=11 // pred_check
          %p194 = pneg %p145
        $region22: #{tpu_custom_call.1} parent=11 // pred_check_branch
          %196 = sbr.rel (%p194) target = $region24
        $region23: #{tpu_custom_call.1} parent=11 // pred_region
          _
        $region24: #{tpu_custom_call.1} parent=11 // pred_fallthru
          _
      $region12: #{tpu_custom_call.1} parent=5 // pred_fallthru
        _
      %p197 = scmp.lt.s32.totalorder %s14, 2
      // Predicated region
      $region25: #{tpu_custom_call.1} parent=5 // pred_check
        %p198 = pneg %p197
      $region26: #{tpu_custom_call.1} parent=5 // pred_check_branch
        %200 = sbr.rel (%p198) target = $region28
      $region27: #{tpu_custom_call.1} parent=5 // pred_region
        // Predicated region
        $region29: #{tpu_custom_call.1} parent=27 // pred_check
          %p201 = pneg %p48
        $region30: #{tpu_custom_call.1} parent=27 // pred_check_branch
          %203 = sbr.rel (%p201) target = $region32
        $region31: #{tpu_custom_call.1} parent=27 // pred_region
          %s204 = smul.u32 2, %s21
          %p205 = scmp.lt.s32.totalorder %s22, 1
          %s206 = scalar_select %p205, %s22, 1
          %p207 = scmp.lt.s32.totalorder %s204, 1
          %s208 = scalar_select %p207, %s204, 1
          %s209 = smul.addr %s206, 2
          %s210 = sadd.s32 %s208, %s209
          %s211 = smul.addr %s210, 4
          %s212 = scalar_lea.vmem %s0, %s211
          %s213 = smul.u32 2, %s21
        $region32: #{tpu_custom_call.1} parent=27 // pred_fallthru
          _
        // Predicated region
        $region33: #{tpu_custom_call.1} parent=27 // pred_check
          %p214 = pneg %p76
        $region34: #{tpu_custom_call.1} parent=27 // pred_check_branch
          %216 = sbr.rel (%p214) target = $region36
        $region35: #{tpu_custom_call.1} parent=27 // pred_region
          %s217 = smul.u32 2, %s21
          %p218 = scmp.lt.s32.totalorder %s22, 1
          %s219 = scalar_select %p218, %s22, 1
          %p220 = scmp.lt.s32.totalorder %s217, 1
          %s221 = scalar_select %p220, %s217, 1
          %s222 = smul.addr %s219, 8
          %s223 = sadd.s32 %s221, %s222
          %s224 = smul.addr %s223, 8
          %s225 = scalar_lea.vmem %s1, %s224
          %s226 = smul.u32 2, %s21
        $region36: #{tpu_custom_call.1} parent=27 // pred_fallthru
          _
      $region28: #{tpu_custom_call.1} parent=5 // pred_fallthru
        _
      %p227 = scmp.le.s32.totalorder 1, %s14
      %p228 = scmp.lt.s32.totalorder %s14, 3
      %p229 = pnand %p227, %p228
      %p230 = pneg %p229
      // Predicated region
      $region37: #{tpu_custom_call.1} parent=5 // pred_check
        _
      $region38: #{tpu_custom_call.1} parent=5 // pred_check_branch
        %232 = sbr.rel (%p229) target = $region40
      $region39: #{tpu_custom_call.1} parent=5 // pred_region
        %s233 = ssub.s32 %s14, 1
        %s234 = smul.u32 2, %s23
        %p235 = scmp.lt.s32.totalorder %s24, 1
        %s236 = scalar_select %p235, %s24, 1
        %p237 = scmp.lt.s32.totalorder %s234, 1
        %s238 = scalar_select %p237, %s234, 1
        %s239 = smul.addr %s236, 2
        %s240 = sadd.s32 %s238, %s239
        %s241 = smul.addr %s240, 4
        %s242 = scalar_lea.vmem %s0, %s241
        %p243 = pneg %p54
        %p244 = pneg %p51
        %s245 = smul.u32 2, %s23
        %p246 = scmp.lt.s32.totalorder %s24, 1
        %s247 = scalar_select %p246, %s24, 1
        %p248 = scmp.lt.s32.totalorder %s245, 1
        %s249 = scalar_select %p248, %s245, 1
        %s250 = smul.addr %s247, 8
        %s251 = sadd.s32 %s249, %s250
        %s252 = smul.addr %s251, 8
        %s253 = scalar_lea.vmem %s1, %s252
        %p254 = pneg %p82
        %p255 = pneg %p79
        %p256 = pneg %p103
        %p257 = pneg %p100
        %p258 = pneg %p124
        %p259 = pneg %p121
        %p260 = pneg %p145
        %p261 = pneg %p142
        %p262 = pneg %p173
        %p263 = pneg %p170
        %s264 = sand.u32 %s160, 1
        %s265 = scalar_lea.sflag [#allocation3], %s264
        %s266 = sand.u32 %s160, 1
        %s267 = smul.addr %s266, 64
        %s268 = scalar_lea.vmem [#allocation2], %s267
        %s269 = smul.u32 2, %s23
        %p270 = scmp.lt.s32.totalorder %s24, 1
        %s271 = scalar_select %p270, %s24, 1
        %p272 = scmp.lt.s32.totalorder %s269, 1
        %s273 = scalar_select %p272, %s269, 1
        %s274 = smul.addr %s271, 2
        %s275 = sadd.s32 %s273, %s274
        %s276 = smul.addr %s275, 4
        %s277 = scalar_lea.vmem %s0, %s276
        %s278 = smul.u32 2, %s23
        %s279 = smul.u32 2, %s23
        %p280 = scmp.lt.s32.totalorder %s24, 1
        %s281 = scalar_select %p280, %s24, 1
        %p282 = scmp.lt.s32.totalorder %s279, 1
        %s283 = scalar_select %p282, %s279, 1
        %s284 = smul.addr %s281, 8
        %s285 = sadd.s32 %s283, %s284
        %s286 = smul.addr %s285, 8
        %s287 = scalar_lea.vmem %s1, %s286
        %s288 = smul.u32 2, %s23
        %s289 = smul.u32 2, %s23
        %v290 = vld [vmem:[%s277] sm:$0xff]
        %v291 = vld [vmem:[%s287] sm:$0xff]
        %v292 = vld [vmem:[%s287 + $0x8] sm:$0xff]
        %v293 = vld [vmem:[%s287 + $0x10] sm:$0xff]
        %v294 = vld [vmem:[%s287 + $0x18] sm:$0xff]
        %v295 = vld [vmem:[%s287 + $0x20] sm:$0xff]
        %v296 = vld [vmem:[%s287 + $0x28] sm:$0xff]
        %v297 = vld [vmem:[%s287 + $0x30] sm:$0xff]
        %v298 = vld [vmem:[%s287 + $0x38] sm:$0xff]
        %v299 = vld [vmem:[%s2] sm:$0xff]
        %v300 = vld [vmem:[%s2 + $0x8] sm:$0xff]
        %v301 = vld [vmem:[%s2 + $0x10] sm:$0xff]
        %v302 = vld [vmem:[%s2 + $0x18] sm:$0xff]
        %v303 = vld [vmem:[%s2 + $0x20] sm:$0xff]
        %v304 = vld [vmem:[%s2 + $0x28] sm:$0xff]
        %v305 = vld [vmem:[%s2 + $0x30] sm:$0xff]
        %v306 = vld [vmem:[%s2 + $0x38] sm:$0xff]
        %v307 = vld [vmem:[%s2 + $0x40] sm:$0xff]
        %v308 = vld [vmem:[%s2 + $0x48] sm:$0xff]
        %v309 = vld [vmem:[%s2 + $0x50] sm:$0xff]
        %v310 = vld [vmem:[%s2 + $0x58] sm:$0xff]
        %v311 = vld [vmem:[%s2 + $0x60] sm:$0xff]
        %v312 = vld [vmem:[%s2 + $0x68] sm:$0xff]
        %v313 = vld [vmem:[%s2 + $0x70] sm:$0xff]
        %v314 = vld [vmem:[%s2 + $0x78] sm:$0xff]
        %v315 = vld [vmem:[%s3] sm:$0xff]
        %v316 = vld [vmem:[%s3 + $0x8] sm:$0xff]
        %v317 = vld [vmem:[%s3 + $0x10] sm:$0xff]
        %v318 = vld [vmem:[%s3 + $0x18] sm:$0xff]
        %v319 = vld [vmem:[%s3 + $0x20] sm:$0xff]
        %v320 = vld [vmem:[%s3 + $0x28] sm:$0xff]
        %v321 = vld [vmem:[%s3 + $0x30] sm:$0xff]
        %v322 = vld [vmem:[%s3 + $0x38] sm:$0xff]
        %v323 = vld [vmem:[%s3 + $0x40] sm:$0xff]
        %v324 = vld [vmem:[%s3 + $0x48] sm:$0xff]
        %v325 = vld [vmem:[%s3 + $0x50] sm:$0xff]
        %v326 = vld [vmem:[%s3 + $0x58] sm:$0xff]
        %v327 = vld [vmem:[%s3 + $0x60] sm:$0xff]
        %v328 = vld [vmem:[%s3 + $0x68] sm:$0xff]
        %v329 = vld [vmem:[%s3 + $0x70] sm:$0xff]
        %v330 = vld [vmem:[%s3 + $0x78] sm:$0xff]
        %vm331 = vcmask 261120
        %v333 = vsel %vm331, %v315, 0
        %v336 = vsel %vm331, %v316, 0
        %v339 = vsel %vm331, %v317, 0
        %v342 = vsel %vm331, %v318, 0
        %v345 = vsel %vm331, %v319, 0
        %v348 = vsel %vm331, %v320, 0
        %v351 = vsel %vm331, %v321, 0
        %v354 = vsel %vm331, %v322, 0
        %v357 = vsel %vm331, %v323, 0
        %v360 = vsel %vm331, %v324, 0
        %v363 = vsel %vm331, %v325, 0
        %v366 = vsel %vm331, %v326, 0
        %v369 = vsel %vm331, %v327, 0
        %v372 = vsel %vm331, %v328, 0
        %v375 = vsel %vm331, %v329, 0
        %v378 = vsel %vm331, %v330, 0
        %380 = vmatprep.subr.mxu0 %v292
        %381 = vmatpush1.msra.mxu0 %v291
        %382 = vmatprep.subr.mxu0 %v294
        %383 = vmatpush1.msra.mxu0 %v293
        %384 = vmatprep.subr.mxu0 %v296
        %385 = vmatpush1.msra.mxu0 %v295
        %386 = vmatprep.subr.mxu0 %v298
        %387 = vmatpush1.msra.mxu0 %v297
        %388 = vmatprep.subr.mxu0 0.0
        %389 = vmatpush1.msra.mxu0 0.0
        %390 = vmatprep.subr.mxu0 0.0
        %391 = vmatpush1.msra.mxu0 0.0
        %392 = vmatprep.subr.mxu0 0.0
        %393 = vmatpush1.msra.mxu0 0.0
        %394 = vmatprep.subr.mxu0 0.0
        %395 = vmatpush1.msra.mxu0 0.0
        %396 = vmatprep.subr.mxu0 0.0
        %397 = vmatpush1.msra.mxu0 0.0
        %398 = vmatprep.subr.mxu0 0.0
        %399 = vmatpush1.msra.mxu0 0.0
        %400 = vmatprep.subr.mxu0 0.0
        %401 = vmatpush1.msra.mxu0 0.0
        %402 = vmatprep.subr.mxu0 0.0
        %403 = vmatpush1.msra.mxu0 0.0
        %404 = vmatprep.subr.mxu0 0.0
        %405 = vmatpush1.msra.mxu0 0.0
        %406 = vmatprep.subr.mxu0 0.0
        %407 = vmatpush1.msra.mxu0 0.0
        %408 = vmatprep.subr.mxu0 0.0
        %409 = vmatpush1.msra.mxu0 0.0
        %410 = vmatprep.subr.mxu0 0.0
        %411 = vmatpush1.msra.mxu0 0.0
        %412 = vmatprep.subr.mxu0 0.0
        %413 = vmatpush1.msra.mxu0 0.0
        %414 = vmatprep.subr.mxu0 0.0
        %415 = vmatpush1.msra.mxu0 0.0
        %416 = vmatprep.subr.mxu0 0.0
        %417 = vmatpush1.msra.mxu0 0.0
        %418 = vmatprep.subr.mxu0 0.0
        %419 = vmatpush1.msra.mxu0 0.0
        %420 = vmatprep.subr.mxu0 0.0
        %421 = vmatpush1.msra.mxu0 0.0
        %422 = vmatprep.subr.mxu0 0.0
        %423 = vmatpush1.msra.mxu0 0.0
        %424 = vmatprep.subr.mxu0 0.0
        %425 = vmatpush1.msra.mxu0 0.0
        %426 = vmatprep.subr.mxu0 0.0
        %427 = vmatpush1.msra.mxu0 0.0
        %428 = vmatprep.subr.mxu0 0.0
        %429 = vmatpush1.msra.mxu0 0.0
        %430 = vmatprep.subr.mxu0 0.0
        %431 = vmatpush1.msra.mxu0 0.0
        %432 = vmatprep.subr.mxu0 0.0
        %433 = vmatpush1.msra.mxu0 0.0
        %434 = vmatprep.subr.mxu0 0.0
        %435 = vmatpush1.msra.mxu0 0.0
        %436 = vmatprep.subr.mxu0 0.0
        %437 = vmatpush1.msra.mxu0 0.0
        %438 = vmatprep.subr.mxu0 0.0
        %439 = vmatpush1.msra.mxu0 0.0
        %440 = vmatprep.subr.mxu0 0.0
        %441 = vmatpush1.msra.mxu0 0.0
        %442 = vmatprep.subr.mxu0 0.0
        %443 = vmatpush1.msra.mxu0 0.0
        %444 = vmatprep.mubr.f32.mxu0 0.0
        %445 = vmatmul.mubr.f32.gmra.mrb[0].mxu0 %v333
        %v446 = vpop.f32.mrb[0].mxu0
        %v447 = vadd.f32 0.0, %v446
        %v448 = vpop.f32.mrb[0].mxu0
        %v449 = vadd.f32 0.0, %v448
        %450 = vmatprep.mubr.f32.mxu0 0.0
        %451 = vmatmul.mubr.f32.gmra.mrb[0].mxu0 %v336
        %v452 = vpop.f32.mrb[0].mxu0
        %v453 = vadd.f32 0.0, %v452
        %v454 = vpop.f32.mrb[0].mxu0
        %v455 = vadd.f32 0.0, %v454
        %456 = vmatprep.mubr.f32.mxu0 0.0
        %457 = vmatmul.mubr.f32.gmra.mrb[0].mxu0 %v339
        %v458 = vpop.f32.mrb[0].mxu0
        %v459 = vadd.f32 0.0, %v458
        %v460 = vpop.f32.mrb[0].mxu0
        %v461 = vadd.f32 0.0, %v460
        %462 = vmatprep.mubr.f32.mxu0 0.0
        %463 = vmatmul.mubr.f32.gmra.mrb[0].mxu0 %v342
        %v464 = vpop.f32.mrb[0].mxu0
        %v465 = vadd.f32 0.0, %v464
        %v466 = vpop.f32.mrb[0].mxu0
        %v467 = vadd.f32 0.0, %v466
        %468 = vmatprep.mubr.f32.mxu0 0.0
        %469 = vmatmul.mubr.f32.gmra.mrb[0].mxu0 %v345
        %v470 = vpop.f32.mrb[0].mxu0
        %v471 = vadd.f32 0.0, %v470
        %v472 = vpop.f32.mrb[0].mxu0
        %v473 = vadd.f32 0.0, %v472
        %474 = vmatprep.mubr.f32.mxu0 0.0
        %475 = vmatmul.mubr.f32.gmra.mrb[0].mxu0 %v348
        %v476 = vpop.f32.mrb[0].mxu0
        %v477 = vadd.f32 0.0, %v476
        %v478 = vpop.f32.mrb[0].mxu0
        %v479 = vadd.f32 0.0, %v478
        %480 = vmatprep.mubr.f32.mxu0 0.0
        %481 = vmatmul.mubr.f32.gmra.mrb[0].mxu0 %v351
        %v482 = vpop.f32.mrb[0].mxu0
        %v483 = vadd.f32 0.0, %v482
        %v484 = vpop.f32.mrb[0].mxu0
        %v485 = vadd.f32 0.0, %v484
        %486 = vmatprep.mubr.f32.mxu0 0.0
        %487 = vmatmul.mubr.f32.gmra.mrb[0].mxu0 %v354
        %v488 = vpop.f32.mrb[0].mxu0
        %v489 = vadd.f32 0.0, %v488
        %v490 = vpop.f32.mrb[0].mxu0
        %v491 = vadd.f32 0.0, %v490
        %492 = vmatprep.mubr.f32.mxu0 0.0
        %493 = vmatmul.mubr.f32.gmra.mrb[0].mxu0 %v357
        %v494 = vpop.f32.mrb[0].mxu0
        %v495 = vadd.f32 0.0, %v494
        %v496 = vpop.f32.mrb[0].mxu0
        %v497 = vadd.f32 0.0, %v496
        %498 = vmatprep.mubr.f32.mxu0 0.0
        %499 = vmatmul.mubr.f32.gmra.mrb[0].mxu0 %v360
        %v500 = vpop.f32.mrb[0].mxu0
        %v501 = vadd.f32 0.0, %v500
        %v502 = vpop.f32.mrb[0].mxu0
        %v503 = vadd.f32 0.0, %v502
        %504 = vmatprep.mubr.f32.mxu0 0.0
        %505 = vmatmul.mubr.f32.gmra.mrb[0].mxu0 %v363
        %v506 = vpop.f32.mrb[0].mxu0
        %v507 = vadd.f32 0.0, %v506
        %v508 = vpop.f32.mrb[0].mxu0
        %v509 = vadd.f32 0.0, %v508
        %510 = vmatprep.mubr.f32.mxu0 0.0
        %511 = vmatmul.mubr.f32.gmra.mrb[0].mxu0 %v366
        %v512 = vpop.f32.mrb[0].mxu0
        %v513 = vadd.f32 0.0, %v512
        %v514 = vpop.f32.mrb[0].mxu0
        %v515 = vadd.f32 0.0, %v514
        %516 = vmatprep.mubr.f32.mxu0 0.0
        %517 = vmatmul.mubr.f32.gmra.mrb[0].mxu0 %v369
        %v518 = vpop.f32.mrb[0].mxu0
        %v519 = vadd.f32 0.0, %v518
        %v520 = vpop.f32.mrb[0].mxu0
        %v521 = vadd.f32 0.0, %v520
        %522 = vmatprep.mubr.f32.mxu0 0.0
        %523 = vmatmul.mubr.f32.gmra.mrb[0].mxu0 %v372
        %v524 = vpop.f32.mrb[0].mxu0
        %v525 = vadd.f32 0.0, %v524
        %v526 = vpop.f32.mrb[0].mxu0
        %v527 = vadd.f32 0.0, %v526
        %528 = vmatprep.mubr.f32.mxu0 0.0
        %529 = vmatmul.mubr.f32.gmra.mrb[0].mxu0 %v375
        %v530 = vpop.f32.mrb[0].mxu0
        %v531 = vadd.f32 0.0, %v530
        %v532 = vpop.f32.mrb[0].mxu0
        %v533 = vadd.f32 0.0, %v532
        %534 = vmatprep.mubr.f32.mxu0 0.0
        %535 = vmatmul.mubr.f32.gmra.mrb[0].mxu0 %v378
        %v536 = vpop.f32.mrb[0].mxu0
        %v537 = vadd.f32 0.0, %v536
        %v538 = vpop.f32.mrb[0].mxu0
        %v539 = vadd.f32 0.0, %v538
        %540 = vdwg.mxu0
        %v542 = vcombine.high %v290, %v290
        %vm543 = vcmask 31744
        %v545 = vsel %vm543, %v299, 0
        %v548 = vsel %vm543, %v300, 0
        %v551 = vsel %vm543, %v301, 0
        %v554 = vsel %vm543, %v302, 0
        %v557 = vsel %vm543, %v303, 0
        %v560 = vsel %vm543, %v304, 0
        %v563 = vsel %vm543, %v305, 0
        %v566 = vsel %vm543, %v306, 0
        %v569 = vsel %vm543, %v307, 0
        %v572 = vsel %vm543, %v308, 0
        %v575 = vsel %vm543, %v309, 0
        %v578 = vsel %vm543, %v310, 0
        %v581 = vsel %vm543, %v311, 0
        %v584 = vsel %vm543, %v312, 0
        %v587 = vsel %vm543, %v313, 0
        %v590 = vsel %vm543, %v314, 0
        %vm592 = vcmask 1043456
        %v593 = vsel %vm592, %v290, 0
        %v595 = vsel %vm592, %v542, 0
        %597 = vmatprep.subr.mxu0 %v595
        %598 = vmatpush1.msra.mxu0 %v593
        %599 = vmatprep.subr.mxu0 0.0
        %600 = vmatpush1.msra.mxu0 0.0
        %601 = vmatprep.subr.mxu0 0.0
        %602 = vmatpush1.msra.mxu0 0.0
        %603 = vmatprep.subr.mxu0 0.0
        %604 = vmatpush1.msra.mxu0 0.0
        %605 = vmatprep.subr.mxu0 0.0
        %606 = vmatpush1.msra.mxu0 0.0
        %607 = vmatprep.subr.mxu0 0.0
        %608 = vmatpush1.msra.mxu0 0.0
        %609 = vmatprep.subr.mxu0 0.0
        %610 = vmatpush1.msra.mxu0 0.0
        %611 = vmatprep.subr.mxu0 0.0
        %612 = vmatpush1.msra.mxu0 0.0
        %613 = vmatprep.subr.mxu0 0.0
        %614 = vmatpush1.msra.mxu0 0.0
        %615 = vmatprep.subr.mxu0 0.0
        %616 = vmatpush1.msra.mxu0 0.0
        %617 = vmatprep.subr.mxu0 0.0
        %618 = vmatpush1.msra.mxu0 0.0
        %619 = vmatprep.subr.mxu0 0.0
        %620 = vmatpush1.msra.mxu0 0.0
        %621 = vmatprep.subr.mxu0 0.0
        %622 = vmatpush1.msra.mxu0 0.0
        %623 = vmatprep.subr.mxu0 0.0
        %624 = vmatpush1.msra.mxu0 0.0
        %625 = vmatprep.subr.mxu0 0.0
        %626 = vmatpush1.msra.mxu0 0.0
        %627 = vmatprep.subr.mxu0 0.0
        %628 = vmatpush1.msra.mxu0 0.0
        %629 = vmatprep.subr.mxu0 0.0
        %630 = vmatpush1.msra.mxu0 0.0
        %631 = vmatprep.subr.mxu0 0.0
        %632 = vmatpush1.msra.mxu0 0.0
        %633 = vmatprep.subr.mxu0 0.0
        %634 = vmatpush1.msra.mxu0 0.0
        %635 = vmatprep.subr.mxu0 0.0
        %636 = vmatpush1.msra.mxu0 0.0
        %637 = vmatprep.subr.mxu0 0.0
        %638 = vmatpush1.msra.mxu0 0.0
        %639 = vmatprep.subr.mxu0 0.0
        %640 = vmatpush1.msra.mxu0 0.0
        %641 = vmatprep.subr.mxu0 0.0
        %642 = vmatpush1.msra.mxu0 0.0
        %643 = vmatprep.subr.mxu0 0.0
        %644 = vmatpush1.msra.mxu0 0.0
        %645 = vmatprep.subr.mxu0 0.0
        %646 = vmatpush1.msra.mxu0 0.0
        %647 = vmatprep.subr.mxu0 0.0
        %648 = vmatpush1.msra.mxu0 0.0
        %649 = vmatprep.subr.mxu0 0.0
        %650 = vmatpush1.msra.mxu0 0.0
        %651 = vmatprep.subr.mxu0 0.0
        %652 = vmatpush1.msra.mxu0 0.0
        %653 = vmatprep.subr.mxu0 0.0
        %654 = vmatpush1.msra.mxu0 0.0
        %655 = vmatprep.subr.mxu0 0.0
        %656 = vmatpush1.msra.mxu0 0.0
        %657 = vmatprep.subr.mxu0 0.0
        %658 = vmatpush1.msra.mxu0 0.0
        %659 = vmatprep.subr.mxu0 0.0
        %660 = vmatpush1.msra.mxu0 0.0
        %661 = vmatprep.mubr.f32.mxu0 0.0
        %662 = vmatmul.mubr.f32.gmra.mrb[0].mxu0 %v545
        %v663 = vpop.f32.mrb[0].mxu0
        %v664 = vadd.f32 %v447, %v663
        %v665 = vpop.f32.mrb[0].mxu0
        %v666 = vadd.f32 %v449, %v665
        %667 = vmatprep.mubr.f32.mxu0 0.0
        %668 = vmatmul.mubr.f32.gmra.mrb[0].mxu0 %v548
        %v669 = vpop.f32.mrb[0].mxu0
        %v670 = vadd.f32 %v453, %v669
        %v671 = vpop.f32.mrb[0].mxu0
        %v672 = vadd.f32 %v455, %v671
        %673 = vmatprep.mubr.f32.mxu0 0.0
        %674 = vmatmul.mubr.f32.gmra.mrb[0].mxu0 %v551
        %v675 = vpop.f32.mrb[0].mxu0
        %v676 = vadd.f32 %v459, %v675
        %v677 = vpop.f32.mrb[0].mxu0
        %v678 = vadd.f32 %v461, %v677
        %679 = vmatprep.mubr.f32.mxu0 0.0
        %680 = vmatmul.mubr.f32.gmra.mrb[0].mxu0 %v554
        %v681 = vpop.f32.mrb[0].mxu0
        %v682 = vadd.f32 %v465, %v681
        %v683 = vpop.f32.mrb[0].mxu0
        %v684 = vadd.f32 %v467, %v683
        %685 = vmatprep.mubr.f32.mxu0 0.0
        %686 = vmatmul.mubr.f32.gmra.mrb[0].mxu0 %v557
        %v687 = vpop.f32.mrb[0].mxu0
        %v688 = vadd.f32 %v471, %v687
        %v689 = vpop.f32.mrb[0].mxu0
        %v690 = vadd.f32 %v473, %v689
        %691 = vmatprep.mubr.f32.mxu0 0.0
        %692 = vmatmul.mubr.f32.gmra.mrb[0].mxu0 %v560
        %v693 = vpop.f32.mrb[0].mxu0
        %v694 = vadd.f32 %v477, %v693
        %v695 = vpop.f32.mrb[0].mxu0
        %v696 = vadd.f32 %v479, %v695
        %697 = vmatprep.mubr.f32.mxu0 0.0
        %698 = vmatmul.mubr.f32.gmra.mrb[0].mxu0 %v563
        %v699 = vpop.f32.mrb[0].mxu0
        %v700 = vadd.f32 %v483, %v699
        %v701 = vpop.f32.mrb[0].mxu0
        %v702 = vadd.f32 %v485, %v701
        %703 = vmatprep.mubr.f32.mxu0 0.0
        %704 = vmatmul.mubr.f32.gmra.mrb[0].mxu0 %v566
        %v705 = vpop.f32.mrb[0].mxu0
        %v706 = vadd.f32 %v489, %v705
        %v707 = vpop.f32.mrb[0].mxu0
        %v708 = vadd.f32 %v491, %v707
        %709 = vmatprep.mubr.f32.mxu0 0.0
        %710 = vmatmul.mubr.f32.gmra.mrb[0].mxu0 %v569
        %v711 = vpop.f32.mrb[0].mxu0
        %v712 = vadd.f32 %v495, %v711
        %v713 = vpop.f32.mrb[0].mxu0
        %v714 = vadd.f32 %v497, %v713
        %715 = vmatprep.mubr.f32.mxu0 0.0
        %716 = vmatmul.mubr.f32.gmra.mrb[0].mxu0 %v572
        %v717 = vpop.f32.mrb[0].mxu0
        %v718 = vadd.f32 %v501, %v717
        %v719 = vpop.f32.mrb[0].mxu0
        %v720 = vadd.f32 %v503, %v719
        %721 = vmatprep.mubr.f32.mxu0 0.0
        %722 = vmatmul.mubr.f32.gmra.mrb[0].mxu0 %v575
        %v723 = vpop.f32.mrb[0].mxu0
        %v724 = vadd.f32 %v507, %v723
        %v725 = vpop.f32.mrb[0].mxu0
        %v726 = vadd.f32 %v509, %v725
        %727 = vmatprep.mubr.f32.mxu0 0.0
        %728 = vmatmul.mubr.f32.gmra.mrb[0].mxu0 %v578
        %v729 = vpop.f32.mrb[0].mxu0
        %v730 = vadd.f32 %v513, %v729
        %v731 = vpop.f32.mrb[0].mxu0
        %v732 = vadd.f32 %v515, %v731
        %733 = vmatprep.mubr.f32.mxu0 0.0
        %734 = vmatmul.mubr.f32.gmra.mrb[0].mxu0 %v581
        %v735 = vpop.f32.mrb[0].mxu0
        %v736 = vadd.f32 %v519, %v735
        %v737 = vpop.f32.mrb[0].mxu0
        %v738 = vadd.f32 %v521, %v737
        %739 = vmatprep.mubr.f32.mxu0 0.0
        %740 = vmatmul.mubr.f32.gmra.mrb[0].mxu0 %v584
        %v741 = vpop.f32.mrb[0].mxu0
        %v742 = vadd.f32 %v525, %v741
        %v743 = vpop.f32.mrb[0].mxu0
        %v744 = vadd.f32 %v527, %v743
        %745 = vmatprep.mubr.f32.mxu0 0.0
        %746 = vmatmul.mubr.f32.gmra.mrb[0].mxu0 %v587
        %v747 = vpop.f32.mrb[0].mxu0
        %v748 = vadd.f32 %v531, %v747
        %v749 = vpop.f32.mrb[0].mxu0
        %v750 = vadd.f32 %v533, %v749
        %751 = vmatprep.mubr.f32.mxu0 0.0
        %752 = vmatmul.mubr.f32.gmra.mrb[0].mxu0 %v590
        %v753 = vpop.f32.mrb[0].mxu0
        %v754 = vadd.f32 %v537, %v753
        %v755 = vpop.f32.mrb[0].mxu0
        %v756 = vadd.f32 %v539, %v755
        %757 = vdwg.mxu0
        %v758 = vld [vmem:[%s4] sm:$0xff]
        %v759 = vld [vmem:[%s4 + $0x8] sm:$0xff]
        %v760 = vld [vmem:[%s4 + $0x10] sm:$0xff]
        %v761 = vld [vmem:[%s4 + $0x18] sm:$0xff]
        %v762 = vld [vmem:[%s4 + $0x20] sm:$0xff]
        %v763 = vld [vmem:[%s4 + $0x28] sm:$0xff]
        %v764 = vld [vmem:[%s4 + $0x30] sm:$0xff]
        %v765 = vld [vmem:[%s4 + $0x38] sm:$0xff]
        %v766 = vld [vmem:[%s4 + $0x40] sm:$0xff]
        %v767 = vld [vmem:[%s4 + $0x48] sm:$0xff]
        %v768 = vld [vmem:[%s4 + $0x50] sm:$0xff]
        %v769 = vld [vmem:[%s4 + $0x58] sm:$0xff]
        %v770 = vld [vmem:[%s4 + $0x60] sm:$0xff]
        %v771 = vld [vmem:[%s4 + $0x68] sm:$0xff]
        %v772 = vld [vmem:[%s4 + $0x70] sm:$0xff]
        %v773 = vld [vmem:[%s4 + $0x78] sm:$0xff]
        %775 = vset.pattern.permute.xlu0 0
        %776 = vperm.xlu0 %775, %v758
        %v777 = vpop.permute.xlu0 %776
        %780 = vset.pattern.permute.xlu0 0
        %781 = vperm.xlu0 %780, %v759
        %v782 = vpop.permute.xlu0 %781
        %785 = vset.pattern.permute.xlu0 0
        %786 = vperm.xlu0 %785, %v760
        %v787 = vpop.permute.xlu0 %786
        %790 = vset.pattern.permute.xlu0 0
        %791 = vperm.xlu0 %790, %v761
        %v792 = vpop.permute.xlu0 %791
        %795 = vset.pattern.permute.xlu0 0
        %796 = vperm.xlu0 %795, %v762
        %v797 = vpop.permute.xlu0 %796
        %800 = vset.pattern.permute.xlu0 0
        %801 = vperm.xlu0 %800, %v763
        %v802 = vpop.permute.xlu0 %801
        %805 = vset.pattern.permute.xlu0 0
        %806 = vperm.xlu0 %805, %v764
        %v807 = vpop.permute.xlu0 %806
        %810 = vset.pattern.permute.xlu0 0
        %811 = vperm.xlu0 %810, %v765
        %v812 = vpop.permute.xlu0 %811
        %815 = vset.pattern.permute.xlu0 0
        %816 = vperm.xlu0 %815, %v766
        %v817 = vpop.permute.xlu0 %816
        %820 = vset.pattern.permute.xlu0 0
        %821 = vperm.xlu0 %820, %v767
        %v822 = vpop.permute.xlu0 %821
        %825 = vset.pattern.permute.xlu0 0
        %826 = vperm.xlu0 %825, %v768
        %v827 = vpop.permute.xlu0 %826
        %830 = vset.pattern.permute.xlu0 0
        %831 = vperm.xlu0 %830, %v769
        %v832 = vpop.permute.xlu0 %831
        %835 = vset.pattern.permute.xlu0 0
        %836 = vperm.xlu0 %835, %v770
        %v837 = vpop.permute.xlu0 %836
        %840 = vset.pattern.permute.xlu0 0
        %841 = vperm.xlu0 %840, %v771
        %v842 = vpop.permute.xlu0 %841
        %845 = vset.pattern.permute.xlu0 0
        %846 = vperm.xlu0 %845, %v772
        %v847 = vpop.permute.xlu0 %846
        %850 = vset.pattern.permute.xlu0 0
        %851 = vperm.xlu0 %850, %v773
        %v852 = vpop.permute.xlu0 %851
        %v854 = vadd.f32 %v664, %v777
        %v855 = vadd.f32 %v666, %v777
        %v856 = vadd.f32 %v670, %v782
        %v857 = vadd.f32 %v672, %v782
        %v858 = vadd.f32 %v676, %v787
        %v859 = vadd.f32 %v678, %v787
        %v860 = vadd.f32 %v682, %v792
        %v861 = vadd.f32 %v684, %v792
        %v862 = vadd.f32 %v688, %v797
        %v863 = vadd.f32 %v690, %v797
        %v864 = vadd.f32 %v694, %v802
        %v865 = vadd.f32 %v696, %v802
        %v866 = vadd.f32 %v700, %v807
        %v867 = vadd.f32 %v702, %v807
        %v868 = vadd.f32 %v706, %v812
        %v869 = vadd.f32 %v708, %v812
        %v870 = vadd.f32 %v712, %v817
        %v871 = vadd.f32 %v714, %v817
        %v872 = vadd.f32 %v718, %v822
        %v873 = vadd.f32 %v720, %v822
        %v874 = vadd.f32 %v724, %v827
        %v875 = vadd.f32 %v726, %v827
        %v876 = vadd.f32 %v730, %v832
        %v877 = vadd.f32 %v732, %v832
        %v878 = vadd.f32 %v736, %v837
        %v879 = vadd.f32 %v738, %v837
        %v880 = vadd.f32 %v742, %v842
        %v881 = vadd.f32 %v744, %v842
        %v882 = vadd.f32 %v748, %v847
        %v883 = vadd.f32 %v750, %v847
        %v884 = vadd.f32 %v754, %v852
        %v885 = vadd.f32 %v756, %v852
        %v886 = vxor.u32 %v854, 2147483648
        %v887 = vxor.u32 %v855, 2147483648
        %v888 = vxor.u32 %v856, 2147483648
        %v889 = vxor.u32 %v857, 2147483648
        %v890 = vxor.u32 %v858, 2147483648
        %v891 = vxor.u32 %v859, 2147483648
        %v892 = vxor.u32 %v860, 2147483648
        %v893 = vxor.u32 %v861, 2147483648
        %v894 = vmul.f32 %v886, 1.442695
        %v895 = vpow.pop %v894
        %v896 = vmul.f32 %v887, 1.442695
        %v897 = vpow.pop %v896
        %v898 = vmul.f32 %v888, 1.442695
        %v899 = vpow.pop %v898
        %v900 = vmul.f32 %v889, 1.442695
        %v901 = vpow.pop %v900
        %v902 = vmul.f32 %v890, 1.442695
        %v903 = vpow.pop %v902
        %v904 = vmul.f32 %v891, 1.442695
        %v905 = vpow.pop %v904
        %v906 = vmul.f32 %v892, 1.442695
        %v907 = vpow.pop %v906
        %v908 = vmul.f32 %v893, 1.442695
        %v909 = vpow.pop %v908
        %v910 = vadd.f32 %v895, 1.0
        %v911 = vadd.f32 %v897, 1.0
        %v912 = vadd.f32 %v899, 1.0
        %v913 = vadd.f32 %v901, 1.0
        %v914 = vadd.f32 %v903, 1.0
        %v915 = vadd.f32 %v905, 1.0
        %v916 = vadd.f32 %v907, 1.0
        %v917 = vadd.f32 %v909, 1.0
        %v918 = vrcp.pop %v910
        %v919 = vmul.f32 1.0, %v918
        %v920 = vrcp.pop %v911
        %v921 = vmul.f32 1.0, %v920
        %v922 = vrcp.pop %v912
        %v923 = vmul.f32 1.0, %v922
        %v924 = vrcp.pop %v913
        %v925 = vmul.f32 1.0, %v924
        %v926 = vrcp.pop %v914
        %v927 = vmul.f32 1.0, %v926
        %v928 = vrcp.pop %v915
        %v929 = vmul.f32 1.0, %v928
        %v930 = vrcp.pop %v916
        %v931 = vmul.f32 1.0, %v930
        %v932 = vrcp.pop %v917
        %v933 = vmul.f32 1.0, %v932
        %v934 = vxor.u32 %v862, 2147483648
        %v935 = vxor.u32 %v863, 2147483648
        %v936 = vxor.u32 %v864, 2147483648
        %v937 = vxor.u32 %v865, 2147483648
        %v938 = vxor.u32 %v866, 2147483648
        %v939 = vxor.u32 %v867, 2147483648
        %v940 = vxor.u32 %v868, 2147483648
        %v941 = vxor.u32 %v869, 2147483648
        %v942 = vmul.f32 %v934, 1.442695
        %v943 = vpow.pop %v942
        %v944 = vmul.f32 %v935, 1.442695
        %v945 = vpow.pop %v944
        %v946 = vmul.f32 %v936, 1.442695
        %v947 = vpow.pop %v946
        %v948 = vmul.f32 %v937, 1.442695
        %v949 = vpow.pop %v948
        %v950 = vmul.f32 %v938, 1.442695
        %v951 = vpow.pop %v950
        %v952 = vmul.f32 %v939, 1.442695
        %v953 = vpow.pop %v952
        %v954 = vmul.f32 %v940, 1.442695
        %v955 = vpow.pop %v954
        %v956 = vmul.f32 %v941, 1.442695
        %v957 = vpow.pop %v956
        %v958 = vadd.f32 %v943, 1.0
        %v959 = vadd.f32 %v945, 1.0
        %v960 = vadd.f32 %v947, 1.0
        %v961 = vadd.f32 %v949, 1.0
        %v962 = vadd.f32 %v951, 1.0
        %v963 = vadd.f32 %v953, 1.0
        %v964 = vadd.f32 %v955, 1.0
        %v965 = vadd.f32 %v957, 1.0
        %v966 = vrcp.pop %v958
        %v967 = vmul.f32 1.0, %v966
        %v968 = vrcp.pop %v959
        %v969 = vmul.f32 1.0, %v968
        %v970 = vrcp.pop %v960
        %v971 = vmul.f32 1.0, %v970
        %v972 = vrcp.pop %v961
        %v973 = vmul.f32 1.0, %v972
        %v974 = vrcp.pop %v962
        %v975 = vmul.f32 1.0, %v974
        %v976 = vrcp.pop %v963
        %v977 = vmul.f32 1.0, %v976
        %v978 = vrcp.pop %v964
        %v979 = vmul.f32 1.0, %v978
        %v980 = vrcp.pop %v965
        %v981 = vmul.f32 1.0, %v980
        %v982 = vmul.f32 %v878, %v919
        %v983 = vmul.f32 %v879, %v921
        %v984 = vmul.f32 %v880, %v923
        %v985 = vmul.f32 %v881, %v925
        %v986 = vmul.f32 %v882, %v927
        %v987 = vmul.f32 %v883, %v929
        %v988 = vmul.f32 %v884, %v931
        %v989 = vmul.f32 %v885, %v933
        %v990 = vadd.f32 %v870, %v982
        %v991 = vadd.f32 %v871, %v983
        %v992 = vadd.f32 %v872, %v984
        %v993 = vadd.f32 %v873, %v985
        %v994 = vadd.f32 %v874, %v986
        %v995 = vadd.f32 %v875, %v987
        %v996 = vadd.f32 %v876, %v988
        %v997 = vadd.f32 %v877, %v989
        %v998 = vtanh.pop %v990
        %v999 = vtanh.pop %v991
        %v1000 = vtanh.pop %v992
        %v1001 = vtanh.pop %v993
        %v1002 = vtanh.pop %v994
        %v1003 = vtanh.pop %v995
        %v1004 = vtanh.pop %v996
        %v1005 = vtanh.pop %v997
        %v1006 = vsub.f32 1.0, %v967
        %v1007 = vsub.f32 1.0, %v969
        %v1008 = vsub.f32 1.0, %v971
        %v1009 = vsub.f32 1.0, %v973
        %v1010 = vsub.f32 1.0, %v975
        %v1011 = vsub.f32 1.0, %v977
        %v1012 = vsub.f32 1.0, %v979
        %v1013 = vsub.f32 1.0, %v981
        %v1014 = vmul.f32 %v1006, %v998
        %v1015 = vmul.f32 %v1007, %v999
        %v1016 = vmul.f32 %v1008, %v1000
        %v1017 = vmul.f32 %v1009, %v1001
        %v1018 = vmul.f32 %v1010, %v1002
        %v1019 = vmul.f32 %v1011, %v1003
        %v1020 = vmul.f32 %v1012, %v1004
        %v1021 = vmul.f32 %v1013, %v1005
        %v1022 = vmul.f32 %v967, %v291
        %v1023 = vmul.f32 %v969, %v292
        %v1024 = vmul.f32 %v971, %v293
        %v1025 = vmul.f32 %v973, %v294
        %v1026 = vmul.f32 %v975, %v295
        %v1027 = vmul.f32 %v977, %v296
        %v1028 = vmul.f32 %v979, %v297
        %v1029 = vmul.f32 %v981, %v298
        %v1030 = vadd.f32 %v1014, %v1022
        %v1031 = vadd.f32 %v1015, %v1023
        %v1032 = vadd.f32 %v1016, %v1024
        %v1033 = vadd.f32 %v1017, %v1025
        %v1034 = vadd.f32 %v1018, %v1026
        %v1035 = vadd.f32 %v1019, %v1027
        %v1036 = vadd.f32 %v1020, %v1028
        %v1037 = vadd.f32 %v1021, %v1029
        %1038 = vst [vmem:[%s268] sm:$0xff] %v1030
        %1039 = vst [vmem:[%s268 + $0x8] sm:$0xff] %v1031
        %1040 = vst [vmem:[%s268 + $0x10] sm:$0xff] %v1032
        %1041 = vst [vmem:[%s268 + $0x18] sm:$0xff] %v1033
        %1042 = vst [vmem:[%s268 + $0x20] sm:$0xff] %v1034
        %1043 = vst [vmem:[%s268 + $0x28] sm:$0xff] %v1035
        %1044 = vst [vmem:[%s268 + $0x30] sm:$0xff] %v1036
        %1045 = vst [vmem:[%s268 + $0x38] sm:$0xff] %v1037
        %s1046 = sand.u32 %s160, 1
        %s1047 = scalar_lea.sflag [#allocation3], %s1046
        %s1048 = sand.u32 %s160, 1
        %s1049 = smul.addr %s1048, 64
        %s1050 = scalar_lea.vmem [#allocation2], %s1049
        // Predicated region
        $region41: #{tpu_custom_call.1} parent=39 // pred_check
          %p1051 = pneg %p170
        $region42: #{tpu_custom_call.1} parent=39 // pred_check_branch
          %1053 = sbr.rel (%p1051) target = $region44
        $region43: #{tpu_custom_call.1} parent=39 // pred_region
          %s1054 = smul.u32 2, %s23
          %s1056 = ssub.s32 1024, 1024
          %1057 = vsyncadd %s1047, %s1056
          %s1058 = smul.addr %s24, 8
          %s1059 = sadd.s32 %s1054, %s1058
          %s1060 = smul.addr %s1059, 128
          %s1061 = scalar_lea.hbm %s5, %s1060
          %s1062 = sshll.u32 %s1050, 4
          %s1063 = int_to_ptr.vmem [resolvable:$true] %s1062
          %1068 = dma.vmem_to_hbm [thread:$0]  %s1063, 1024, %s1061, %s1047, 256, 256, 16
        $region44: #{tpu_custom_call.1} parent=39 // pred_fallthru
          _
      $region40: #{tpu_custom_call.1} parent=5 // pred_fallthru
        _
      %p1069 = scmp.le.s32.totalorder 2, %s14
      // Predicated region
      $region45: #{tpu_custom_call.1} parent=5 // pred_check
        %p1070 = pneg %p1069
      $region46: #{tpu_custom_call.1} parent=5 // pred_check_branch
        %1072 = sbr.rel (%p1070) target = $region48
      $region47: #{tpu_custom_call.1} parent=5 // pred_region
        %s1073 = ssub.s32 %s14, 2
        // Predicated region
        $region49: #{tpu_custom_call.1} parent=47 // pred_check
          %p1074 = pneg %p176
        $region50: #{tpu_custom_call.1} parent=47 // pred_check_branch
          %1076 = sbr.rel (%p1074) target = $region52
        $region51: #{tpu_custom_call.1} parent=47 // pred_region
          %s1077 = sand.u32 %s161, 1
          %s1078 = scalar_lea.sflag [#allocation3], %s1077
          %s1079 = sand.u32 %s161, 1
          %s1080 = smul.addr %s1079, 64
          %s1081 = scalar_lea.vmem [#allocation2], %s1080
          %1082 = dma.done %s1078, 1024
        $region52: #{tpu_custom_call.1} parent=47 // pred_fallthru
          _
      $region48: #{tpu_custom_call.1} parent=5 // pred_fallthru
        _
    $region6: #{tpu_custom_call.1} parent=1 // loop_footer
      %s18 = sadd.s32 1, %s14
    $region7: #{tpu_custom_call.1} parent=1 // loop_footer_branch
      %13 = sbr.rel target = $region3
    $region8: #{tpu_custom_call.1} parent=1 // loop_exit
      _
    %1083 = vsyncpa [#allocation3], 1
    %s1084 = scalar_lea.sflag [#allocation3], 1
    %1085 = vsyncpa %s1084, 1

</llo_original>
